<compile_context>
chip_gen: v7x
topology: tpu7x:2x2x1
jax: 0.10.0
libtpu: 0.0.40
codegen_flags: <defaults>
</compile_context>

<pallas_src>
import jax
import jax.numpy as jnp
from jax.experimental import pallas as pl
from jax.experimental.pallas import tpu as pltpu


# ---------------------------------------------------------------------------
# Kernel body
# ---------------------------------------------------------------------------
def _mish_kernel(x_ref, o_ref):
    x = x_ref[...].astype(jnp.float32)
    # tanh(softplus(x)) = ((1+e)^2 - 1) / ((1+e)^2 + 1) = e*(e+2) / (e*(e+2)+2)
    # with e = exp(x); no cancellation.  Clamping the exp argument at 20 keeps
    # e*(e+2) finite; for x >= 20 the ratio is exactly 1.0 in f32 anyway, so
    # no extra select is needed.
    e = jnp.exp(jnp.minimum(x, 20.0))
    num = e * (e + 2.0)
    o_ref[...] = (x * (num / (num + 2.0))).astype(o_ref.dtype)


def _mish_jnp(x):
    xf = x.astype(jnp.float32)
    sp = jnp.logaddexp(xf, 0.0)  # softplus
    return (xf * jnp.tanh(sp)).astype(x.dtype)


# ---------------------------------------------------------------------------
# Generation-specific tiling
# ---------------------------------------------------------------------------
def _tpu_generation():
    try:
        kind = jax.devices()[0].device_kind.lower()
    except Exception:
        kind = ""
    if "v7" in kind:
        return "v7"
    if "v6" in kind:
        return "v6"
    if "v5" in kind:
        return "v5"
    return "other"


# (target_block_bytes, vmem_limit_bytes or None for compiler default)
_GEN_TILING = {
    "v7": (4 * 1024 * 1024, 24 * 1024 * 1024),   # 64 MiB phys / 32 MiB scoped
    "v6": (4 * 1024 * 1024, 40 * 1024 * 1024),   # 128 MiB phys, modest bump
    "v5": (2 * 1024 * 1024, None),               # must fit 16 MiB scoped default
    "other": (2 * 1024 * 1024, None),
}


def _choose_lanes(shape, n, *, max_lanes):
    """Pick a lane width (multiple of 128).

    Prefer suffix products of the trailing dims (layout-preserving merge of
    contiguous trailing axes) before an arbitrary divisor of n.
    """
    prod = 1
    for d in reversed(shape):
        prod *= d
        if prod > max_lanes:
            break
        if prod % 128 == 0:
            return prod
    for c in (4096, 2048, 1024, 512, 256, 128):
        if c <= max_lanes and n % c == 0:
            return c
    return None


# ---------------------------------------------------------------------------
# Pallas runner on an already lane-aligned 2-D view
# ---------------------------------------------------------------------------
def _mish_2d(x2d, *, block_bytes, vmem_limit, want_two_steps, donate):
    rows, lanes = x2d.shape
    itemsize = jnp.dtype(x2d.dtype).itemsize

    # ~block_bytes per buffer, 32-sublane aligned.
    br = max(32, block_bytes // (lanes * itemsize))
    br = (br // 32) * 32
    if br >= rows:
        if want_two_steps and rows >= 64:
            # Split into (at least) 2 row-blocks so both v7x TensorCores work.
            br = ((pl.cdiv(rows, 2) + 31) // 32) * 32
        else:
            br = rows  # block dim == full array dim is always legal
    grid = (pl.cdiv(rows, br),)

    n = rows * lanes
    cost = pl.CostEstimate(
        flops=6 * n,
        transcendentals=n,              # single exp per element
        bytes_accessed=2 * n * itemsize,
    )

    cparams = dict(dimension_semantics=("parallel",))
    if vmem_limit is not None:
        cparams["vmem_limit_bytes"] = vmem_limit

    return pl.pallas_call(
        _mish_kernel,
        out_shape=jax.ShapeDtypeStruct((rows, lanes), x2d.dtype),
        grid_spec=pltpu.PrefetchScalarGridSpec(
            num_scalar_prefetch=0,
            grid=grid,
            in_specs=[pl.BlockSpec((br, lanes), lambda i: (i, 0))],
            out_specs=pl.BlockSpec((br, lanes), lambda i: (i, 0)),
        ),
        compiler_params=pltpu.CompilerParams(**cparams),
        cost_estimate=cost,
        input_output_aliases=({0: 0} if donate else {}),
    )(x2d)


# ---------------------------------------------------------------------------
# Public entry point
# ---------------------------------------------------------------------------
def mish(x, *, donate=False):
    """Elementwise Mish via Pallas. Accepts any shape / float dtype.

    Set donate=True only if the caller does not reuse `x` (lets XLA alias the
    output onto the input HBM buffer -> lower peak HBM for big activations).
    """
    orig_shape = x.shape
    n = x.size
    if n == 0:
        return x

    gen = _tpu_generation()
    block_bytes, vmem_limit = _GEN_TILING[gen]
    want_two_steps = gen == "v7"
    itemsize = jnp.dtype(x.dtype).itemsize
    max_lanes = max(128, block_bytes // (32 * itemsize))

    lanes = _choose_lanes(orig_shape, n, max_lanes=max_lanes)

    if lanes is not None:
        # Common path: contiguous trailing-dim merge (or exact divisor) -> no
        # pad / slice copies around the pallas call.
        x2d = x.reshape(-1, lanes)
        out2d = _mish_2d(
            x2d,
            block_bytes=block_bytes,
            vmem_limit=vmem_limit,
            want_two_steps=want_two_steps,
            donate=donate,
        )
        return out2d.reshape(orig_shape)

    # Rare fallback: n is not a multiple of 128.  Run the kernel on the
    # aligned prefix and handle the (< lanes)-element tail with plain jnp --
    # no full-array pad on input and no full-array slice on output.
    flat = jnp.ravel(x)
    lanes = 1024
    while lanes > n and lanes > 128:
        lanes //= 2
    n_main = (n // lanes) * lanes
    if n_main == 0:
        return _mish_jnp(x)  # tiny array; a kernel launch is not worth it

    main = _mish_2d(
        flat[:n_main].reshape(-1, lanes),
        block_bytes=block_bytes,
        vmem_limit=vmem_limit,
        want_two_steps=want_two_steps,
        donate=False,
    ).reshape(-1)
    tail = _mish_jnp(flat[n_main:])
    return jnp.concatenate([main, tail]).reshape(orig_shape)


# ---------------------------------------------------------------------------
# Reference + self-test
# ---------------------------------------------------------------------------
def mish_reference(x):
    return _mish_jnp(x)


if __name__ == "__main__":
    key = jax.random.PRNGKey(0)

    # Small NCHW input consistent with a conv-net activation.
    x = jax.random.normal(key, (2, 4, 16, 16), dtype=jnp.float32) * 3.0
    y = jax.block_until_ready(mish(x))
    y_ref = mish_reference(x)
    assert y.shape == x.shape and y.dtype == x.dtype
    assert jnp.allclose(y, y_ref, atol=1e-5, rtol=1e-5), "Mish mismatch vs reference"

    # Exercise the non-multiple-of-128 fallback path (prefix kernel + jnp tail).
    x2 = jax.random.normal(jax.random.PRNGKey(1), (2, 3, 5, 7), dtype=jnp.float32) * 3.0
    y2 = jax.block_until_ready(mish(x2))
    y2_ref = mish_reference(x2)
    assert y2.shape == x2.shape and y2.dtype == x2.dtype
    assert jnp.allclose(y2, y2_ref, atol=1e-5, rtol=1e-5), "Mish mismatch (fallback path)"

    print("KERNEL_OK")
</pallas_src>

<mosaic_0001>
module attributes {stable_mosaic.version = 11 : i64} {
  func.func @_mish_kernel(%arg0: i32, %arg1: memref<8x256xf32, #tpu.memory_space<vmem>>, %arg2: memref<8x256xf32, #tpu.memory_space<vmem>>) attributes {dimension_semantics = [#tpu.dimension_semantics<parallel>], iteration_bounds = array<i64: 1>, scalar_prefetch = 0 : i64, scratch_operands = 0 : i64, tpu.core_type = #tpu.core_type<tc>, window_params = [{transform_indices = @transform_0, window_bounds = array<i64: 8, 256>}, {transform_indices = @transform_1, window_bounds = array<i64: 8, 256>}]} {
    %c0 = arith.constant 0 : index
    %c0_0 = arith.constant 0 : index
    %0 = vector.load %arg1[%c0, %c0_0] : memref<8x256xf32, #tpu.memory_space<vmem>>, vector<8x256xf32>
    %cst = arith.constant 2.000000e+01 : f32
    %1 = vector.broadcast %cst : f32 to vector<8x256xf32>
    %2 = arith.minimumf %0, %1 : vector<8x256xf32>
    %3 = math.exp %2 : vector<8x256xf32>
    %cst_1 = arith.constant 2.000000e+00 : f32
    %4 = vector.broadcast %cst_1 : f32 to vector<8x256xf32>
    %5 = arith.addf %3, %4 : vector<8x256xf32>
    %6 = arith.mulf %3, %5 : vector<8x256xf32>
    %cst_2 = arith.constant 2.000000e+00 : f32
    %7 = vector.broadcast %cst_2 : f32 to vector<8x256xf32>
    %8 = arith.addf %6, %7 : vector<8x256xf32>
    %9 = arith.divf %6, %8 : vector<8x256xf32>
    %10 = arith.mulf %0, %9 : vector<8x256xf32>
    %c0_3 = arith.constant 0 : index
    %c0_4 = arith.constant 0 : index
    %11 = vector.load %arg2[%c0_3, %c0_4] : memref<8x256xf32, #tpu.memory_space<vmem>>, vector<8x256xf32>
    tpu.vector_store %arg2[%c0_3, %c0_4], %10 {strides = array<i32>} : memref<8x256xf32, #tpu.memory_space<vmem>>, vector<8x256xf32>,
    return
  }
  func.func @transform_0(%arg0: i32) -> (i32, i32) {
    %c0_i32 = arith.constant 0 : i32
    %c0_i32_0 = arith.constant 0 : i32
    return %arg0, %c0_i32 : i32, i32
  }
  func.func @transform_1(%arg0: i32) -> (i32, i32) {
    %c0_i32 = arith.constant 0 : i32
    %c0_i32_0 = arith.constant 0 : i32
    return %arg0, %c0_i32 : i32, i32
  }
}

</mosaic_0001>

<llo_original>
// kernel: tpu_custom_call.1
$region0: #{tpu_custom_call.1}
  #allocation0 [shape = 'u32[]', space=smem, size = 0x4, offset = 0x4, fixed_abs, tag = 'smem constant byte address 0x4 - core index']
  #allocation1 [shape = 'u32[144,128]{1,0:T(1,128)}', space=vmem, size = 0x12000, scoped, tag = 'internal scratch']
  %s0 = inlined_call_operand.hbm [shape: f32[8,256], index: 0, kind: input, shape index: {}]
  %s1 = inlined_call_operand.hbm [shape: f32[8,256], index: 1, kind: output, shape index: {}]
  %s2 = sld [smem:[#allocation0]]
  $region18: #{tpu_custom_call.1} parent=0
    _
  %s4 = ssub.s32 1, %s2
  %s5 = scalar_select 0, %s4, %s2
  $region1: #{tpu_custom_call.1} parent=0
    #allocation2 [shape = 'u8[8192]{0}', space=vmem, size = 0x2000, scoped, tag = 'input window, operand 0, single buffered']
    #allocation3 [shape = 's32[1]{0}', space=sflag, size = 0x4, scoped, tag = 'scoped memory for tpu_custom_call.1']
    #allocation4 [shape = 's32[1]{0}', space=sflag, size = 0x4, scoped, tag = 'scoped memory for tpu_custom_call.1']
    #allocation5 [shape = 'u8[8192]{0}', space=vmem, size = 0x2000, scoped, tag = 'output window, operand 0, single buffered']
    %6 = vsyncpa [#allocation3], 0
    %7 = vsyncpa [#allocation4], 0
    // Predicated region
    $region2: #{tpu_custom_call.1} parent=1 // pred_check
      _
    $region3: #{tpu_custom_call.1} parent=1 // pred_check_branch
      %9 = sbr.rel (0) target = $region5
    $region4: #{tpu_custom_call.1} parent=1 // pred_region
      %s11 = ssub.s32 256, 256
      %12 = vsyncadd [#allocation3], %s11
      %s14 = sshll.u32 [#allocation2], 4
      %s15 = int_to_ptr.vmem [resolvable:$true] %s14
      %17 = dma.hbm_to_vmem [thread:$0]  %s0, 256, %s15, [#allocation3]
    $region5: #{tpu_custom_call.1} parent=1 // pred_fallthru
      _
    // Predicated region
    $region6: #{tpu_custom_call.1} parent=1 // pred_check
      _
    $region7: #{tpu_custom_call.1} parent=1 // pred_check_branch
      %19 = sbr.rel (0) target = $region9
    $region8: #{tpu_custom_call.1} parent=1 // pred_region
      %20 = dma.done [#allocation3], 256
    $region9: #{tpu_custom_call.1} parent=1 // pred_fallthru
      _
    %v21 = vld [vmem:[#allocation2] sm:$0xff]
    %v22 = vld [vmem:[#allocation2 + $0x8] sm:$0xff]
    %v23 = vmin.f32 %v21, 20.0
    %v24 = vmin.f32 %v22, 20.0
    %v25 = vmul.f32 %v23, 1.442695
    %v26 = vpow.pop %v25
    %v27 = vmul.f32 %v24, 1.442695
    %v28 = vpow.pop %v27
    %v29 = vadd.f32 %v26, 2.0
    %v30 = vadd.f32 %v28, 2.0
    %v31 = vmul.f32 %v26, %v29
    %v32 = vmul.f32 %v28, %v30
    %v33 = vadd.f32 %v31, 2.0
    %v34 = vadd.f32 %v32, 2.0
    %v35 = vrcp.pop %v33
    %v36 = vmul.f32 %v31, %v35
    %v37 = vrcp.pop %v34
    %v38 = vmul.f32 %v32, %v37
    %v39 = vmul.f32 %v21, %v36
    %v40 = vmul.f32 %v22, %v38
    %41 = vst [vmem:[#allocation5] sm:$0xff] %v39
    %42 = vst [vmem:[#allocation5 + $0x8] sm:$0xff] %v40
    // Predicated region
    $region10: #{tpu_custom_call.1} parent=1 // pred_check
      _
    $region11: #{tpu_custom_call.1} parent=1 // pred_check_branch
      %44 = sbr.rel (0) target = $region13
    $region12: #{tpu_custom_call.1} parent=1 // pred_region
      %s46 = ssub.s32 256, 256
      %47 = vsyncadd [#allocation4], %s46
      %s49 = sshll.u32 [#allocation5], 4
      %s50 = int_to_ptr.vmem [resolvable:$true] %s49
      %52 = dma.vmem_to_hbm [thread:$0]  %s50, 256, %s1, [#allocation4]
    $region13: #{tpu_custom_call.1} parent=1 // pred_fallthru
      _
    // Predicated region
    $region14: #{tpu_custom_call.1} parent=1 // pred_check
      _
    $region15: #{tpu_custom_call.1} parent=1 // pred_check_branch
      %54 = sbr.rel (0) target = $region17
    $region16: #{tpu_custom_call.1} parent=1 // pred_region
      %55 = dma.done [#allocation4], 256
    $region17: #{tpu_custom_call.1} parent=1 // pred_fallthru
      _
    %56 = vsyncpa [#allocation3], 1
    %57 = vsyncpa [#allocation4], 1

</llo_original>
